<compile_context>
chip_gen: v7x
topology: tpu7x:2x2x1
jax: 0.10.0
libtpu: 0.0.40
codegen_flags: <defaults>
</compile_context>

<pallas_src>
import math

import jax
import jax.numpy as jnp
from jax.experimental import pallas as pl
from jax.experimental.pallas import tpu as pltpu


def _myprelu_kernel(x_ref, a_ref, b_ref, o_ref):
    x = x_ref[...]                       # (TM, TL)
    a = a_ref[...]                       # (1, TL) -> sublane broadcast
    b = b_ref[...]                       # (1, TL)
    o_ref[...] = x * jnp.where(x < 0, a, b)


def _round_up(v, m):
    return ((v + m - 1) // m) * m


def _pick_lane_layout(total, h, w, max_lanes=2048):
    """Pick (rows, lanes) with lanes a multiple of lcm(W, 128) when possible
    (lane-dense -> unmasked vst); otherwise fall back to (N*C, H*W)."""
    base = (w * 128) // math.gcd(w, 128)          # lcm(W, 128), multiple of W
    if total % base == 0:
        k_max = max(1, min(max_lanes // base, total // base))
        for k in range(k_max, 0, -1):
            lanes = k * base
            if total % lanes == 0:
                return total // lanes, lanes
    # Fallback: fold H into the last dim; last vreg column may be masked if
    # H*W is not a multiple of 128 (still correct).
    return total // (h * w), h * w


def _pick_lane_tile(lanes, max_lanes=2048):
    """Lane-dim block: full extent when small, else a 128-multiple divisor."""
    if lanes <= max_lanes:
        return lanes
    t = (max_lanes // 128) * 128
    while t >= 128:
        if lanes % t == 0:
            return t
        t -= 128
    return lanes                                   # full extent is always legal


def _pick_row_tile(rows, lane_tile, itemsize, lane_steps, row_align,
                   target_block_bytes=4 << 20):
    """Row-dim block: dtype-aligned, ~target_block_bytes, no wrapper padding
    needed (cdiv grid + masked boundary block handles the ragged tail)."""
    if rows <= row_align:
        return rows                                # full extent
    tm = target_block_bytes // max(1, lane_tile * itemsize)
    tm = max(row_align, (tm // row_align) * row_align)
    # Only force extra row blocks when the lane grid cannot already feed
    # v7x's two TensorCores; one extra grid step is negligible on 1-TC chips.
    if lane_steps < 2 and rows > 2 * row_align:
        cap = max(row_align, _round_up(pl.cdiv(rows, 2), row_align))
        tm = min(tm, cap)
    return min(tm, _round_up(rows, row_align))


def my_prelu(x, alpha, beta):
    """x: (N, C, H, W); alpha/beta: (W,) broadcasting over the last axis."""
    n, c, h, w = x.shape
    total = n * c * h * w
    itemsize = jnp.dtype(x.dtype).itemsize
    row_align = max(8, 32 // itemsize)             # 8 f32 / 16 bf16 / 32 int8

    rows, lanes = _pick_lane_layout(total, h, w)
    x2d = x.reshape(rows, lanes)
    # lanes is a multiple of W, so lane j of every row maps to alpha[j % W]
    # (matches PyTorch last-axis broadcasting of the (W,) parameters).
    reps = lanes // w
    a2d = jnp.tile(alpha.astype(x.dtype), reps).reshape(1, lanes)
    b2d = jnp.tile(beta.astype(x.dtype), reps).reshape(1, lanes)

    tl = _pick_lane_tile(lanes)
    lane_steps = lanes // tl
    tm = _pick_row_tile(rows, tl, itemsize, lane_steps, row_align)
    row_steps = pl.cdiv(rows, tm)                  # ragged tail: no jnp.pad

    # Lane axis outer so the (1, tl) param blocks stay resident across the
    # inner row loop instead of being re-DMA'd every step.
    grid = (lane_steps, row_steps)

    out2d = pl.pallas_call(
        _myprelu_kernel,
        out_shape=jax.ShapeDtypeStruct((rows, lanes), x.dtype),
        grid_spec=pltpu.PrefetchScalarGridSpec(
            num_scalar_prefetch=0,
            grid=grid,
            in_specs=[
                pl.BlockSpec((tm, tl), lambda j, i: (i, j)),
                pl.BlockSpec((1, tl), lambda j, i: (0, j)),
                pl.BlockSpec((1, tl), lambda j, i: (0, j)),
            ],
            out_specs=pl.BlockSpec((tm, tl), lambda j, i: (i, j)),
        ),
        compiler_params=pltpu.CompilerParams(
            dimension_semantics=("parallel", "parallel"),
            vmem_limit_bytes=48 * 1024 * 1024,     # safe on v5e/v6e/v7x
        ),
    )(x2d, a2d, b2d)

    return out2d.reshape(n, c, h, w)


if __name__ == "__main__":
    key = jax.random.PRNGKey(0)
    kx, ka, kb = jax.random.split(key, 3)
    N, C, H, W = 2, 4, 16, 16
    num_parameters = W                    # 1-D param broadcasts over last axis

    x = jax.random.normal(kx, (N, C, H, W), dtype=jnp.float32)
    # Module defaults (0.25 / 1.0) perturbed per-lane so the broadcast mapping
    # is actually exercised by the correctness check.
    alpha = 0.25 + 0.05 * jax.random.normal(ka, (num_parameters,), dtype=jnp.float32)
    beta = 1.0 + 0.05 * jax.random.normal(kb, (num_parameters,), dtype=jnp.float32)

    out = my_prelu(x, alpha, beta)
    jax.block_until_ready(out)

    # Pure-JAX reference (same broadcasting as PyTorch).
    ref = (x * (x < 0).astype(x.dtype) * alpha
           + x * (x > 0).astype(x.dtype) * beta)
    assert out.shape == ref.shape
    assert jnp.allclose(out, ref, atol=1e-6), "mismatch vs reference"

    print("KERNEL_OK")
</pallas_src>

<mosaic_0001>
module attributes {stable_mosaic.version = 11 : i64} {
  func.func @_myprelu_kernel(%arg0: i32, %arg1: i32, %arg2: memref<1x2048xf32, #tpu.memory_space<vmem>>, %arg3: memref<1x2048xf32, #tpu.memory_space<vmem>>, %arg4: memref<1x2048xf32, #tpu.memory_space<vmem>>, %arg5: memref<1x2048xf32, #tpu.memory_space<vmem>>) attributes {dimension_semantics = [#tpu.dimension_semantics<parallel>, #tpu.dimension_semantics<parallel>], iteration_bounds = array<i64: 1, 1>, scalar_prefetch = 0 : i64, scratch_operands = 0 : i64, tpu.core_type = #tpu.core_type<tc>, window_params = [{transform_indices = @transform_0, window_bounds = array<i64: 1, 2048>}, {transform_indices = @transform_1, window_bounds = array<i64: 1, 2048>}, {transform_indices = @transform_2, window_bounds = array<i64: 1, 2048>}, {transform_indices = @transform_3, window_bounds = array<i64: 1, 2048>}]} {
    %c0 = arith.constant 0 : index
    %c0_0 = arith.constant 0 : index
    %0 = vector.load %arg2[%c0, %c0_0] : memref<1x2048xf32, #tpu.memory_space<vmem>>, vector<1x2048xf32>
    %c0_1 = arith.constant 0 : index
    %c0_2 = arith.constant 0 : index
    %1 = vector.load %arg3[%c0_1, %c0_2] : memref<1x2048xf32, #tpu.memory_space<vmem>>, vector<1x2048xf32>
    %c0_3 = arith.constant 0 : index
    %c0_4 = arith.constant 0 : index
    %2 = vector.load %arg4[%c0_3, %c0_4] : memref<1x2048xf32, #tpu.memory_space<vmem>>, vector<1x2048xf32>
    %cst = arith.constant 0.000000e+00 : f32
    %3 = vector.broadcast %cst : f32 to vector<1x2048xf32>
    %4 = arith.cmpf olt, %0, %3 : vector<1x2048xf32>
    %5 = arith.select %4, %1, %2 : vector<1x2048xi1>, vector<1x2048xf32>
    %6 = arith.mulf %0, %5 : vector<1x2048xf32>
    %c0_5 = arith.constant 0 : index
    %c0_6 = arith.constant 0 : index
    %7 = vector.load %arg5[%c0_5, %c0_6] : memref<1x2048xf32, #tpu.memory_space<vmem>>, vector<1x2048xf32>
    tpu.vector_store %arg5[%c0_5, %c0_6], %6 {strides = array<i32>} : memref<1x2048xf32, #tpu.memory_space<vmem>>, vector<1x2048xf32>,
    return
  }
  func.func @transform_0(%arg0: i32, %arg1: i32) -> (i32, i32) {
    %c0_i32 = arith.constant 0 : i32
    return %arg1, %arg0 : i32, i32
  }
  func.func @transform_1(%arg0: i32, %arg1: i32) -> (i32, i32) {
    %c0_i32 = arith.constant 0 : i32
    %c0_i32_0 = arith.constant 0 : i32
    return %c0_i32, %arg0 : i32, i32
  }
  func.func @transform_2(%arg0: i32, %arg1: i32) -> (i32, i32) {
    %c0_i32 = arith.constant 0 : i32
    %c0_i32_0 = arith.constant 0 : i32
    return %c0_i32, %arg0 : i32, i32
  }
  func.func @transform_3(%arg0: i32, %arg1: i32) -> (i32, i32) {
    %c0_i32 = arith.constant 0 : i32
    return %arg1, %arg0 : i32, i32
  }
}

</mosaic_0001>

<llo_original>
// kernel: tpu_custom_call.1
$region0: #{tpu_custom_call.1}
  #allocation0 [shape = 'u32[]', space=smem, size = 0x4, offset = 0x4, fixed_abs, tag = 'smem constant byte address 0x4 - core index']
  #allocation1 [shape = 'u32[144,128]{1,0:T(1,128)}', space=vmem, size = 0x12000, scoped, tag = 'internal scratch']
  %s0 = inlined_call_operand.hbm [shape: f32[1,2048], index: 0, kind: input, shape index: {}]
  %s1 = inlined_call_operand.hbm [shape: f32[1,2048], index: 1, kind: input, shape index: {}]
  %s2 = inlined_call_operand.hbm [shape: f32[1,2048], index: 2, kind: input, shape index: {}]
  %s3 = inlined_call_operand.hbm [shape: f32[1,2048], index: 3, kind: output, shape index: {}]
  %s4 = sld [smem:[#allocation0]]
  $region34: #{tpu_custom_call.1} parent=0
    _
  %s6 = ssub.s32 1, %s4
  %s7 = scalar_select 0, %s6, %s4
  $region1: #{tpu_custom_call.1} parent=0
    #allocation2 [shape = 'u8[8192]{0}', space=vmem, size = 0x2000, scoped, tag = 'input window, operand 0, single buffered']
    #allocation3 [shape = 's32[1]{0}', space=sflag, size = 0x4, scoped, tag = 'scoped memory for tpu_custom_call.1']
    #allocation4 [shape = 's32[1]{0}', space=sflag, size = 0x4, scoped, tag = 'scoped memory for tpu_custom_call.1']
    #allocation5 [shape = 'u8[8192]{0}', space=vmem, size = 0x2000, scoped, tag = 'input window, operand 1, single buffered']
    #allocation6 [shape = 's32[1]{0}', space=sflag, size = 0x4, scoped, tag = 'scoped memory for tpu_custom_call.1']
    #allocation7 [shape = 'u8[8192]{0}', space=vmem, size = 0x2000, scoped, tag = 'input window, operand 2, single buffered']
    #allocation8 [shape = 'u8[8192]{0}', space=vmem, size = 0x2000, scoped, tag = 'output window, operand 0, single buffered']
    %8 = vsyncpa [#allocation3], 0
    %9 = vsyncpa [#allocation6], 0
    %10 = vsyncpa [#allocation4], 0
    // Predicated region
    $region2: #{tpu_custom_call.1} parent=1 // pred_check
      _
    $region3: #{tpu_custom_call.1} parent=1 // pred_check_branch
      %12 = sbr.rel (0) target = $region5
    $region4: #{tpu_custom_call.1} parent=1 // pred_region
      %s14 = ssub.s32 256, 256
      %15 = vsyncadd [#allocation3], %s14
      %s17 = sshll.u32 [#allocation2], 4
      %s18 = int_to_ptr.vmem [resolvable:$true] %s17
      %20 = dma.hbm_to_vmem [thread:$0]  %s0, 256, %s18, [#allocation3]
    $region5: #{tpu_custom_call.1} parent=1 // pred_fallthru
      _
    // Predicated region
    $region6: #{tpu_custom_call.1} parent=1 // pred_check
      _
    $region7: #{tpu_custom_call.1} parent=1 // pred_check_branch
      %22 = sbr.rel (0) target = $region9
    $region8: #{tpu_custom_call.1} parent=1 // pred_region
      %s24 = ssub.s32 256, 256
      %25 = vsyncadd [#allocation6], %s24
      %s27 = sshll.u32 [#allocation5], 4
      %s28 = int_to_ptr.vmem [resolvable:$true] %s27
      %30 = dma.hbm_to_vmem [thread:$0]  %s1, 256, %s28, [#allocation6]
    $region9: #{tpu_custom_call.1} parent=1 // pred_fallthru
      _
    // Predicated region
    $region10: #{tpu_custom_call.1} parent=1 // pred_check
      _
    $region11: #{tpu_custom_call.1} parent=1 // pred_check_branch
      %32 = sbr.rel (0) target = $region13
    $region12: #{tpu_custom_call.1} parent=1 // pred_region
      %s34 = ssub.s32 256, 256
      %35 = vsyncadd [#allocation6], %s34
      %s37 = sshll.u32 [#allocation7], 4
      %s38 = int_to_ptr.vmem [resolvable:$true] %s37
      %40 = dma.hbm_to_vmem [thread:$0]  %s2, 256, %s38, [#allocation6]
    $region13: #{tpu_custom_call.1} parent=1 // pred_fallthru
      _
    // Predicated region
    $region14: #{tpu_custom_call.1} parent=1 // pred_check
      _
    $region15: #{tpu_custom_call.1} parent=1 // pred_check_branch
      %42 = sbr.rel (0) target = $region17
    $region16: #{tpu_custom_call.1} parent=1 // pred_region
      %43 = dma.done [#allocation3], 256
    $region17: #{tpu_custom_call.1} parent=1 // pred_fallthru
      _
    // Predicated region
    $region18: #{tpu_custom_call.1} parent=1 // pred_check
      _
    $region19: #{tpu_custom_call.1} parent=1 // pred_check_branch
      %45 = sbr.rel (0) target = $region21
    $region20: #{tpu_custom_call.1} parent=1 // pred_region
      %46 = dma.done [#allocation6], 256
    $region21: #{tpu_custom_call.1} parent=1 // pred_fallthru
      _
    // Predicated region
    $region22: #{tpu_custom_call.1} parent=1 // pred_check
      _
    $region23: #{tpu_custom_call.1} parent=1 // pred_check_branch
      %48 = sbr.rel (0) target = $region25
    $region24: #{tpu_custom_call.1} parent=1 // pred_region
      %49 = dma.done [#allocation6], 256
    $region25: #{tpu_custom_call.1} parent=1 // pred_fallthru
      _
    %v50 = vld [vmem:[#allocation2] sm:$0xff]
    %v51 = vld [vmem:[#allocation2 + $0x8] sm:$0xff]
    %v52 = vld [vmem:[#allocation5] sm:$0xff]
    %v53 = vld [vmem:[#allocation5 + $0x8] sm:$0xff]
    %v54 = vld [vmem:[#allocation7] sm:$0xff]
    %v55 = vld [vmem:[#allocation7 + $0x8] sm:$0xff]
    %vm56 = vcmp.lt.f32.partialorder %v50, 0.0
    %vm57 = vcmp.lt.f32.partialorder %v51, 0.0
    %v58 = vsel %vm56, %v52, %v54
    %v59 = vsel %vm57, %v53, %v55
    %v60 = vmul.f32 %v50, %v58
    %v61 = vmul.f32 %v51, %v59
    %62 = vst [vmem:[#allocation8] sm:$0xff] %v60
    %63 = vst [vmem:[#allocation8 + $0x8] sm:$0xff] %v61
    // Predicated region
    $region26: #{tpu_custom_call.1} parent=1 // pred_check
      _
    $region27: #{tpu_custom_call.1} parent=1 // pred_check_branch
      %65 = sbr.rel (0) target = $region29
    $region28: #{tpu_custom_call.1} parent=1 // pred_region
      %s67 = ssub.s32 256, 256
      %68 = vsyncadd [#allocation4], %s67
      %s70 = sshll.u32 [#allocation8], 4
      %s71 = int_to_ptr.vmem [resolvable:$true] %s70
      %73 = dma.vmem_to_hbm [thread:$0]  %s71, 256, %s3, [#allocation4]
    $region29: #{tpu_custom_call.1} parent=1 // pred_fallthru
      _
    // Predicated region
    $region30: #{tpu_custom_call.1} parent=1 // pred_check
      _
    $region31: #{tpu_custom_call.1} parent=1 // pred_check_branch
      %75 = sbr.rel (0) target = $region33
    $region32: #{tpu_custom_call.1} parent=1 // pred_region
      %76 = dma.done [#allocation4], 256
    $region33: #{tpu_custom_call.1} parent=1 // pred_fallthru
      _
    %77 = vsyncpa [#allocation3], 1
    %78 = vsyncpa [#allocation6], 1
    %79 = vsyncpa [#allocation4], 1

</llo_original>
